<compile_context>
chip_gen: v7x
topology: tpu7x:2x2x1
jax: 0.10.0
libtpu: 0.0.40
codegen_flags: <defaults>
</compile_context>

<pallas_src>
import functools

import jax
import jax.numpy as jnp
from jax import lax
from jax.experimental import pallas as pl
from jax.experimental.pallas import tpu as pltpu

EPS = 1e-5


def _res2_branch_kernel(x_ref, w_ref, g_ref, b_ref, out_ref, carry, y_scr,
                        *, kernel_size, padding, dilation, nums):
    i = pl.program_id(0)
    B, W, T = x_ref.shape

    # Final grid step (only present when scale != 1): copy the untouched last split.
    @pl.when(i >= nums)
    def _():
        out_ref[...] = x_ref[...]

    @pl.when(i < nums)
    def _():
        @pl.when(i == 0)
        def _():
            carry[...] = jnp.zeros_like(carry)

        x = x_ref[...].astype(jnp.float32)
        sp = carry[...] + x                            # (B, W, T) conv input, f32 carry

        # im2col: K shifted, zero-padded copies of sp stacked along the channel
        # (sublane) axis.  Shifts use pltpu.roll (XLU slot) + boundary mask instead of
        # lane-axis concat/pad or misaligned lane slices.
        views = []
        for k in range(kernel_size):
            s = k * dilation - padding                 # static per-tap time shift
            if s == 0:
                v = sp
            else:
                v = pltpu.roll(sp, shift=(-s) % T, axis=2)
                t_idx = lax.broadcasted_iota(jnp.int32, (B, W, T), 2)
                valid = (t_idx >= -s) if s < 0 else (t_idx < T - s)
                v = jnp.where(valid, v, 0.0)
            views.append(v)
        slab = views[0] if kernel_size == 1 else jnp.concatenate(views, axis=1)

        w = w_ref[0]                                   # (W_out, K*W_in), weight-stationary

        # Conv + ReLU as per-batch 2D MXU matmuls; accumulate BN statistics on the fly.
        inv_n = 1.0 / float(B * T)
        sum_y = jnp.zeros((W, 1), jnp.float32)
        sum_y2 = jnp.zeros((W, 1), jnp.float32)
        for b in range(B):
            y_b = jnp.maximum(
                jnp.dot(w, slab[b], preferred_element_type=jnp.float32), 0.0)  # (W, T)
            y_scr[b] = y_b
            sum_y = sum_y + jnp.sum(y_b, axis=-1, keepdims=True)
            sum_y2 = sum_y2 + jnp.sum(y_b * y_b, axis=-1, keepdims=True)

        # Fused training-mode BatchNorm1d (biased batch variance over (B, T)).
        mean = sum_y * inv_n                           # (W, 1)
        var = sum_y2 * inv_n - mean * mean
        scale_c = g_ref[0] * lax.rsqrt(var + EPS)      # (W, 1)
        shift_c = b_ref[0] - mean * scale_c

        y = y_scr[...]                                 # (B, W, T)
        out_f = y * scale_c + shift_c
        out_ref[...] = out_f.astype(out_ref.dtype)
        carry[...] = out_f                             # keep the f32 carry (no rounding)


def res2conv1d_relu_bn(x, conv_w, gamma, beta, *, scale, kernel_size=1,
                       stride=1, padding=0, dilation=1):
    """x: (B, C, T).  conv_w: (nums, width, width, K) (torch Conv1d weight layout per
    branch).  gamma/beta: (nums, width).  Returns (B, C, T)."""
    assert stride == 1, "only stride=1 implemented"
    # TODO(synk): stride != 1 / non-length-preserving padding changes T_out and breaks
    # the channel concat of the original module too; not implemented.
    assert 2 * padding == dilation * (kernel_size - 1), "conv must preserve time length"
    B, C, T = x.shape
    assert C % scale == 0
    width = C // scale
    nums = scale if scale == 1 else scale - 1
    assert width % 8 == 0 or width == C, "width must be a multiple of 8 for TPU tiling"

    # Tiny weight prep (once, outside the grid): (nums, O, C, K) -> (nums, O, K*C),
    # tap-major on the contraction axis to match the in-kernel im2col stacking order.
    w2 = jnp.transpose(conv_w, (0, 1, 3, 2)).reshape(nums, width, kernel_size * width)
    gamma3 = gamma.reshape(nums, width, 1).astype(jnp.float32)
    beta3 = beta.reshape(nums, width, 1).astype(jnp.float32)

    grid_n = scale if scale != 1 else 1
    last = nums - 1
    clamp = lambda i: jnp.minimum(i, last)   # params unused on the pass-through step

    kernel = functools.partial(_res2_branch_kernel, kernel_size=kernel_size,
                               padding=padding, dilation=dilation, nums=nums)

    out = pl.pallas_call(
        kernel,
        out_shape=jax.ShapeDtypeStruct((B, C, T), x.dtype),
        grid_spec=pltpu.PrefetchScalarGridSpec(
            num_scalar_prefetch=0,
            grid=(grid_n,),
            in_specs=[
                # Channel split i selected straight out of the NCT layout.
                pl.BlockSpec((B, width, T), lambda i: (0, i, 0)),
                pl.BlockSpec((1, width, kernel_size * width),
                             lambda i: (clamp(i), 0, 0)),
                pl.BlockSpec((1, width, 1), lambda i: (clamp(i), 0, 0)),
                pl.BlockSpec((1, width, 1), lambda i: (clamp(i), 0, 0)),
            ],
            out_specs=pl.BlockSpec((B, width, T), lambda i: (0, i, 0)),
            scratch_shapes=[
                pltpu.VMEM((B, width, T), jnp.float32),   # inter-branch carry (f32)
                pltpu.VMEM((B, width, T), jnp.float32),   # post-ReLU activations
            ],
        ),
        compiler_params=pltpu.CompilerParams(
            dimension_semantics=("arbitrary",),           # sequential branch carry
            vmem_limit_bytes=64 * 1024 * 1024,
        ),
    )(x, w2, gamma3, beta3)
    return out


def _reference(x, conv_w, gamma, beta, *, scale, kernel_size, padding, dilation):
    """Pure-JAX replica of the PyTorch forward (training-mode BN)."""
    B, C, T = x.shape
    width = C // scale
    nums = scale if scale == 1 else scale - 1
    spx = [x[:, i * width:(i + 1) * width, :] for i in range(scale)]
    out, sp = [], None
    for i in range(nums):
        sp = spx[0] if i == 0 else sp + spx[i]
        sp_pad = jnp.pad(sp, ((0, 0), (0, 0), (padding, padding)))
        acc = jnp.zeros((B, width, T), jnp.float32)
        for k in range(kernel_size):
            acc = acc + jnp.einsum('oc,bct->bot', conv_w[i, :, :, k],
                                   sp_pad[:, :, k * dilation:k * dilation + T])
        y = jnp.maximum(acc, 0.0)
        mean = y.mean(axis=(0, 2), keepdims=True)
        var = ((y - mean) ** 2).mean(axis=(0, 2), keepdims=True)
        sp = gamma[i][None, :, None] * (y - mean) * jax.lax.rsqrt(var + EPS) \
            + beta[i][None, :, None]
        out.append(sp)
    if scale != 1:
        out.append(spx[nums])
    return jnp.concatenate(out, axis=1)


if __name__ == "__main__":
    key = jax.random.PRNGKey(0)
    B, C, T = 2, 32, 128          # T is a lane-dense multiple of 128
    scale, K, pad, dil = 4, 3, 1, 1
    width = C // scale
    nums = scale - 1

    k1, k2, k3, k4 = jax.random.split(key, 4)
    x = jax.random.normal(k1, (B, C, T), jnp.float32)
    conv_w = 0.1 * jax.random.normal(k2, (nums, width, width, K), jnp.float32)
    gamma = 1.0 + 0.1 * jax.random.normal(k3, (nums, width), jnp.float32)
    beta = 0.1 * jax.random.normal(k4, (nums, width), jnp.float32)

    out = res2conv1d_relu_bn(x, conv_w, gamma, beta, scale=scale,
                             kernel_size=K, padding=pad, dilation=dil)
    out = jax.block_until_ready(out)

    ref = _reference(x, conv_w, gamma, beta, scale=scale,
                     kernel_size=K, padding=pad, dilation=dil)
    assert out.shape == (B, C, T)
    assert jnp.allclose(out, ref, atol=1e-4, rtol=1e-4), "mismatch vs reference"
    print("KERNEL_OK")
</pallas_src>

<mosaic_0001>
module attributes {stable_mosaic.version = 11 : i64} {
  func.func @_res2_branch_kernel(%arg0: i32, %arg1: memref<2x8x128xf32, #tpu.memory_space<vmem>>, %arg2: memref<1x8x24xf32, #tpu.memory_space<vmem>>, %arg3: memref<1x8x1xf32, #tpu.memory_space<vmem>>, %arg4: memref<1x8x1xf32, #tpu.memory_space<vmem>>, %arg5: memref<2x8x128xf32, #tpu.memory_space<vmem>>, %arg6: memref<2x8x128xf32, #tpu.memory_space<vmem>>, %arg7: memref<2x8x128xf32, #tpu.memory_space<vmem>>) attributes {dimension_semantics = [#tpu.dimension_semantics<arbitrary>], iteration_bounds = array<i64: 4>, scalar_prefetch = 0 : i64, scratch_operands = 2 : i64, tpu.core_type = #tpu.core_type<tc>, window_params = [{transform_indices = @transform_0, window_bounds = array<i64: 2, 8, 128>}, {transform_indices = @transform_1, window_bounds = array<i64: 1, 8, 24>}, {transform_indices = @transform_2, window_bounds = array<i64: 1, 8, 1>}, {transform_indices = @transform_3, window_bounds = array<i64: 1, 8, 1>}, {transform_indices = @transform_4, window_bounds = array<i64: 2, 8, 128>}]} {
    %c3_i32 = arith.constant 3 : i32
    %0 = arith.cmpi sge, %arg0, %c3_i32 : i32
    %1 = arith.extui %0 : i1 to i32
    %c0_i32 = arith.constant 0 : i32
    %2 = arith.cmpi ne, %1, %c0_i32 : i32
    scf.if %2 {
      %c0 = arith.constant 0 : index
      %c0_2 = arith.constant 0 : index
      %c0_3 = arith.constant 0 : index
      %6 = vector.load %arg1[%c0, %c0_2, %c0_3] : memref<2x8x128xf32, #tpu.memory_space<vmem>>, vector<2x8x128xf32>
      %c0_4 = arith.constant 0 : index
      %c0_5 = arith.constant 0 : index
      %c0_6 = arith.constant 0 : index
      %7 = vector.load %arg5[%c0_4, %c0_5, %c0_6] : memref<2x8x128xf32, #tpu.memory_space<vmem>>, vector<2x8x128xf32>
      tpu.vector_store %arg5[%c0_4, %c0_5, %c0_6], %6 {strides = array<i32>} : memref<2x8x128xf32, #tpu.memory_space<vmem>>, vector<2x8x128xf32>,
    } else {
    }
    %c3_i32_0 = arith.constant 3 : i32
    %3 = arith.cmpi slt, %arg0, %c3_i32_0 : i32
    %4 = arith.extui %3 : i1 to i32
    %c0_i32_1 = arith.constant 0 : i32
    %5 = arith.cmpi ne, %4, %c0_i32_1 : i32
    scf.if %5 {
      %c0_i32_2 = arith.constant 0 : i32
      %6 = arith.cmpi eq, %arg0, %c0_i32_2 : i32
      %7 = arith.extui %6 : i1 to i32
      %c0_i32_3 = arith.constant 0 : i32
      %8 = arith.cmpi ne, %7, %c0_i32_3 : i32
      scf.if %8 {
        %cst_48 = arith.constant 0.000000e+00 : f32
        %84 = vector.broadcast %cst_48 : f32 to vector<2x8x128xf32>
        %c0_49 = arith.constant 0 : index
        %c0_50 = arith.constant 0 : index
        %c0_51 = arith.constant 0 : index
        %85 = vector.load %arg6[%c0_49, %c0_50, %c0_51] : memref<2x8x128xf32, #tpu.memory_space<vmem>>, vector<2x8x128xf32>
        tpu.vector_store %arg6[%c0_49, %c0_50, %c0_51], %84 {strides = array<i32>} : memref<2x8x128xf32, #tpu.memory_space<vmem>>, vector<2x8x128xf32>,
      } else {
      }
      %c0 = arith.constant 0 : index
      %c0_4 = arith.constant 0 : index
      %c0_5 = arith.constant 0 : index
      %9 = vector.load %arg1[%c0, %c0_4, %c0_5] : memref<2x8x128xf32, #tpu.memory_space<vmem>>, vector<2x8x128xf32>
      %c0_6 = arith.constant 0 : index
      %c0_7 = arith.constant 0 : index
      %c0_8 = arith.constant 0 : index
      %10 = vector.load %arg6[%c0_6, %c0_7, %c0_8] : memref<2x8x128xf32, #tpu.memory_space<vmem>>, vector<2x8x128xf32>
      %11 = arith.addf %10, %9 : vector<2x8x128xf32>
      %c1_i32 = arith.constant 1 : i32
      %12 = tpu.dynamic_rotate %11 by %c1_i32 dim 2 : vector<2x8x128xf32>, i32 -> vector<2x8x128xf32>
      %13 = tpu.iota {dimensions = array<i32: 2>} : vector<2x8x128xi32>
      %c1_i32_9 = arith.constant 1 : i32
      %14 = vector.broadcast %c1_i32_9 : i32 to vector<2x8x128xi32>
      %15 = arith.cmpi sge, %13, %14 : vector<2x8x128xi32>
      %cst = arith.constant 0.000000e+00 : f32
      %16 = vector.broadcast %cst : f32 to vector<2x8x128xf32>
      %17 = arith.select %15, %12, %16 : vector<2x8x128xi1>, vector<2x8x128xf32>
      %c127_i32 = arith.constant 127 : i32
      %18 = tpu.dynamic_rotate %11 by %c127_i32 dim 2 : vector<2x8x128xf32>, i32 -> vector<2x8x128xf32>
      %19 = tpu.iota {dimensions = array<i32: 2>} : vector<2x8x128xi32>
      %c127_i32_10 = arith.constant 127 : i32
      %20 = vector.broadcast %c127_i32_10 : i32 to vector<2x8x128xi32>
      %21 = arith.cmpi slt, %19, %20 : vector<2x8x128xi32>
      %cst_11 = arith.constant 0.000000e+00 : f32
      %22 = vector.broadcast %cst_11 : f32 to vector<2x8x128xf32>
      %23 = arith.select %21, %18, %22 : vector<2x8x128xi1>, vector<2x8x128xf32>
      %24 = tpu.concatenate %17, %11, %23 in 1 : vector<2x8x128xf32>, vector<2x8x128xf32>, vector<2x8x128xf32> -> vector<2x24x128xf32>
      %c0_12 = arith.constant 0 : index
      %c0_13 = arith.constant 0 : index
      %c0_14 = arith.constant 0 : index
      %25 = vector.load %arg2[%c0_12, %c0_13, %c0_14] : memref<1x8x24xf32, #tpu.memory_space<vmem>>, vector<1x8x24xf32>
      %26 = vector.shape_cast %25 : vector<1x8x24xf32> to vector<8x24xf32>
      %cst_15 = arith.constant 0.000000e+00 : f32
      %27 = vector.broadcast %cst_15 : f32 to vector<8x1xf32>
      %cst_16 = arith.constant 0.000000e+00 : f32
      %28 = vector.broadcast %cst_16 : f32 to vector<8x1xf32>
      %29 = vector.extract_strided_slice %24 {offsets = [0, 0, 0], sizes = [1, 24, 128], strides = [1, 1, 1]} : vector<2x24x128xf32> to vector<1x24x128xf32>
      %30 = vector.shape_cast %29 : vector<1x24x128xf32> to vector<24x128xf32>
      %cst_17 = arith.constant dense<0.000000e+00> : vector<8x128xf32>
      %31 = tpu.matmul %26, %30, %cst_17 {dimension_numbers = #tpu.dot_dimension_numbers<[1], [0], [0], [1], [0, 0, 1, 1], [], []>} : vector<8x24xf32>, vector<24x128xf32>, vector<8x128xf32> -> vector<8x128xf32>
      %cst_18 = arith.constant 0.000000e+00 : f32
      %32 = vector.broadcast %cst_18 : f32 to vector<8x128xf32>
      %33 = arith.maximumf %31, %32 : vector<8x128xf32>
      %c0_19 = arith.constant 0 : index
      %c0_20 = arith.constant 0 : index
      %c0_21 = arith.constant 0 : index
      %34 = vector.load %arg7[%c0_19, %c0_20, %c0_21] : memref<2x8x128xf32, #tpu.memory_space<vmem>>, vector<1x8x128xf32>
      %35 = vector.shape_cast %34 : vector<1x8x128xf32> to vector<8x128xf32>
      %36 = vector.shape_cast %33 : vector<8x128xf32> to vector<1x8x128xf32>
      tpu.vector_store %arg7[%c0_19, %c0_20, %c0_21], %36 {strides = array<i32>} : memref<2x8x128xf32, #tpu.memory_space<vmem>>, vector<1x8x128xf32>,
      %cst_22 = arith.constant dense<0.000000e+00> : vector<8xf32>
      %37 = vector.multi_reduction <add>, %33, %cst_22 [1] : vector<8x128xf32> to vector<8xf32>
      %38 = vector.shape_cast %37 : vector<8xf32> to vector<8x1xf32>
      %39 = arith.addf %27, %38 : vector<8x1xf32>
      %40 = arith.mulf %33, %33 : vector<8x128xf32>
      %cst_23 = arith.constant dense<0.000000e+00> : vector<8xf32>
      %41 = vector.multi_reduction <add>, %40, %cst_23 [1] : vector<8x128xf32> to vector<8xf32>
      %42 = vector.shape_cast %41 : vector<8xf32> to vector<8x1xf32>
      %43 = arith.addf %28, %42 : vector<8x1xf32>
      %44 = vector.extract_strided_slice %24 {offsets = [1, 0, 0], sizes = [1, 24, 128], strides = [1, 1, 1]} : vector<2x24x128xf32> to vector<1x24x128xf32>
      %45 = vector.shape_cast %44 : vector<1x24x128xf32> to vector<24x128xf32>
      %cst_24 = arith.constant dense<0.000000e+00> : vector<8x128xf32>
      %46 = tpu.matmul %26, %45, %cst_24 {dimension_numbers = #tpu.dot_dimension_numbers<[1], [0], [0], [1], [0, 0, 1, 1], [], []>} : vector<8x24xf32>, vector<24x128xf32>, vector<8x128xf32> -> vector<8x128xf32>
      %cst_25 = arith.constant 0.000000e+00 : f32
      %47 = vector.broadcast %cst_25 : f32 to vector<8x128xf32>
      %48 = arith.maximumf %46, %47 : vector<8x128xf32>
      %c1 = arith.constant 1 : index
      %c0_26 = arith.constant 0 : index
      %c0_27 = arith.constant 0 : index
      %49 = vector.load %arg7[%c1, %c0_26, %c0_27] : memref<2x8x128xf32, #tpu.memory_space<vmem>>, vector<1x8x128xf32>
      %50 = vector.shape_cast %49 : vector<1x8x128xf32> to vector<8x128xf32>
      %51 = vector.shape_cast %48 : vector<8x128xf32> to vector<1x8x128xf32>
      tpu.vector_store %arg7[%c1, %c0_26, %c0_27], %51 {strides = array<i32>} : memref<2x8x128xf32, #tpu.memory_space<vmem>>, vector<1x8x128xf32>,
      %cst_28 = arith.constant dense<0.000000e+00> : vector<8xf32>
      %52 = vector.multi_reduction <add>, %48, %cst_28 [1] : vector<8x128xf32> to vector<8xf32>
      %53 = vector.shape_cast %52 : vector<8xf32> to vector<8x1xf32>
      %54 = arith.addf %39, %53 : vector<8x1xf32>
      %55 = arith.mulf %48, %48 : vector<8x128xf32>
      %cst_29 = arith.constant dense<0.000000e+00> : vector<8xf32>
      %56 = vector.multi_reduction <add>, %55, %cst_29 [1] : vector<8x128xf32> to vector<8xf32>
      %57 = vector.shape_cast %56 : vector<8xf32> to vector<8x1xf32>
      %58 = arith.addf %43, %57 : vector<8x1xf32>
      %cst_30 = arith.constant 3.906250e-03 : f32
      %59 = vector.broadcast %cst_30 : f32 to vector<8x1xf32>
      %60 = arith.mulf %54, %59 : vector<8x1xf32>
      %cst_31 = arith.constant 3.906250e-03 : f32
      %61 = vector.broadcast %cst_31 : f32 to vector<8x1xf32>
      %62 = arith.mulf %58, %61 : vector<8x1xf32>
      %63 = arith.mulf %60, %60 : vector<8x1xf32>
      %64 = arith.subf %62, %63 : vector<8x1xf32>
      %c0_32 = arith.constant 0 : index
      %c0_33 = arith.constant 0 : index
      %c0_34 = arith.constant 0 : index
      %65 = vector.load %arg3[%c0_32, %c0_33, %c0_34] : memref<1x8x1xf32, #tpu.memory_space<vmem>>, vector<1x8x1xf32>
      %66 = vector.shape_cast %65 : vector<1x8x1xf32> to vector<8x1xf32>
      %cst_35 = arith.constant 9.99999974E-6 : f32
      %67 = vector.broadcast %cst_35 : f32 to vector<8x1xf32>
      %68 = arith.addf %64, %67 : vector<8x1xf32>
      %69 = math.rsqrt %68 : vector<8x1xf32>
      %70 = arith.mulf %66, %69 : vector<8x1xf32>
      %c0_36 = arith.constant 0 : index
      %c0_37 = arith.constant 0 : index
      %c0_38 = arith.constant 0 : index
      %71 = vector.load %arg4[%c0_36, %c0_37, %c0_38] : memref<1x8x1xf32, #tpu.memory_space<vmem>>, vector<1x8x1xf32>
      %72 = vector.shape_cast %71 : vector<1x8x1xf32> to vector<8x1xf32>
      %73 = arith.mulf %60, %70 : vector<8x1xf32>
      %74 = arith.subf %72, %73 : vector<8x1xf32>
      %c0_39 = arith.constant 0 : index
      %c0_40 = arith.constant 0 : index
      %c0_41 = arith.constant 0 : index
      %75 = vector.load %arg7[%c0_39, %c0_40, %c0_41] : memref<2x8x128xf32, #tpu.memory_space<vmem>>, vector<2x8x128xf32>
      %76 = vector.shape_cast %70 : vector<8x1xf32> to vector<1x8x1xf32>
      %77 = vector.broadcast %76 : vector<1x8x1xf32> to vector<2x8x128xf32>
      %78 = arith.mulf %75, %77 : vector<2x8x128xf32>
      %79 = vector.shape_cast %74 : vector<8x1xf32> to vector<1x8x1xf32>
      %80 = vector.broadcast %79 : vector<1x8x1xf32> to vector<2x8x128xf32>
      %81 = arith.addf %78, %80 : vector<2x8x128xf32>
      %c0_42 = arith.constant 0 : index
      %c0_43 = arith.constant 0 : index
      %c0_44 = arith.constant 0 : index
      %82 = vector.load %arg5[%c0_42, %c0_43, %c0_44] : memref<2x8x128xf32, #tpu.memory_space<vmem>>, vector<2x8x128xf32>
      tpu.vector_store %arg5[%c0_42, %c0_43, %c0_44], %81 {strides = array<i32>} : memref<2x8x128xf32, #tpu.memory_space<vmem>>, vector<2x8x128xf32>,
      %c0_45 = arith.constant 0 : index
      %c0_46 = arith.constant 0 : index
      %c0_47 = arith.constant 0 : index
      %83 = vector.load %arg6[%c0_45, %c0_46, %c0_47] : memref<2x8x128xf32, #tpu.memory_space<vmem>>, vector<2x8x128xf32>
      tpu.vector_store %arg6[%c0_45, %c0_46, %c0_47], %81 {strides = array<i32>} : memref<2x8x128xf32, #tpu.memory_space<vmem>>, vector<2x8x128xf32>,
    } else {
    }
    return
  }
  func.func @transform_0(%arg0: i32) -> (i32, i32, i32) {
    %c0_i32 = arith.constant 0 : i32
    %c0_i32_0 = arith.constant 0 : i32
    %c0_i32_1 = arith.constant 0 : i32
    return %c0_i32, %arg0, %c0_i32_0 : i32, i32, i32
  }
  func.func @transform_1(%arg0: i32) -> (i32, i32, i32) {
    %c2_i32 = arith.constant 2 : i32
    %0 = arith.minsi %arg0, %c2_i32 : i32
    %c0_i32 = arith.constant 0 : i32
    %c0_i32_0 = arith.constant 0 : i32
    %c0_i32_1 = arith.constant 0 : i32
    return %0, %c0_i32, %c0_i32_0 : i32, i32, i32
  }
  func.func @transform_2(%arg0: i32) -> (i32, i32, i32) {
    %c2_i32 = arith.constant 2 : i32
    %0 = arith.minsi %arg0, %c2_i32 : i32
    %c0_i32 = arith.constant 0 : i32
    %c0_i32_0 = arith.constant 0 : i32
    %c0_i32_1 = arith.constant 0 : i32
    return %0, %c0_i32, %c0_i32_0 : i32, i32, i32
  }
  func.func @transform_3(%arg0: i32) -> (i32, i32, i32) {
    %c2_i32 = arith.constant 2 : i32
    %0 = arith.minsi %arg0, %c2_i32 : i32
    %c0_i32 = arith.constant 0 : i32
    %c0_i32_0 = arith.constant 0 : i32
    %c0_i32_1 = arith.constant 0 : i32
    return %0, %c0_i32, %c0_i32_0 : i32, i32, i32
  }
  func.func @transform_4(%arg0: i32) -> (i32, i32, i32) {
    %c0_i32 = arith.constant 0 : i32
    %c0_i32_0 = arith.constant 0 : i32
    %c0_i32_1 = arith.constant 0 : i32
    return %c0_i32, %arg0, %c0_i32_0 : i32, i32, i32
  }
}

</mosaic_0001>

<llo_original>
// kernel: tpu_custom_call.1
$region0: #{tpu_custom_call.1}
  #allocation0 [shape = 'u32[]', space=smem, size = 0x4, offset = 0x4, fixed_abs, tag = 'smem constant byte address 0x4 - core index']
  #allocation1 [shape = 'u32[144,128]{1,0:T(1,128)}', space=vmem, size = 0x12000, scoped, tag = 'internal scratch']
  #allocation2 [shape = 'f32[2,8,128]{2,1,0:T(8,128)}', space=vmem, size = 0x2000, scoped, tag = 'scratch operand']
  #allocation3 [shape = 'f32[2,8,128]{2,1,0:T(8,128)}', space=vmem, size = 0x2000, scoped, tag = 'scratch operand']
  %s0 = inlined_call_operand.hbm [shape: f32[2,32,128], index: 0, kind: input, shape index: {}]
  %s1 = inlined_call_operand.hbm [shape: f32[3,8,24], index: 1, kind: input, shape index: {}]
  %s2 = inlined_call_operand.hbm [shape: f32[3,8,1], index: 2, kind: input, shape index: {}]
  %s3 = inlined_call_operand.hbm [shape: f32[3,8,1], index: 3, kind: input, shape index: {}]
  %s4 = inlined_call_operand.hbm [shape: f32[2,32,128], index: 4, kind: output, shape index: {}]
  %s5 = sld [smem:[#allocation0]]
  $region77: #{tpu_custom_call.1} parent=0
    _
  %s7 = ssub.s32 1, %s5
  %s8 = scalar_select 0, %s7, %s5
  $region1: #{tpu_custom_call.1} parent=0
    #allocation4 [shape = 'u8[16384]{0}', space=vmem, size = 0x4000, scoped, tag = 'input window, operand 0']
    #allocation5 [shape = 's32[2]{0}', space=sflag, size = 0x8, scoped, tag = 'scoped memory for tpu_custom_call.1']
    #allocation6 [shape = 's32[2]{0}', space=sflag, size = 0x8, scoped, tag = 'scoped memory for tpu_custom_call.1']
    #allocation7 [shape = 'u8[8192]{0}', space=vmem, size = 0x2000, scoped, tag = 'input window, operand 1']
    #allocation8 [shape = 's32[2]{0}', space=sflag, size = 0x8, scoped, tag = 'scoped memory for tpu_custom_call.1']
    #allocation9 [shape = 'u8[8192]{0}', space=vmem, size = 0x2000, scoped, tag = 'input window, operand 2']
    #allocation10 [shape = 'u8[8192]{0}', space=vmem, size = 0x2000, scoped, tag = 'input window, operand 3']
    #allocation11 [shape = 's32[2]{0}', space=sflag, size = 0x8, scoped, tag = 'scoped memory for tpu_custom_call.1']
    #allocation12 [shape = 'u8[16384]{0}', space=vmem, size = 0x4000, scoped, tag = 'output window, operand 0']
    %9 = vsyncpa [#allocation5], 0
    %s10 = scalar_lea.sflag [#allocation5], 1
    %11 = vsyncpa %s10, 0
    %12 = vsyncpa [#allocation8], 0
    %s13 = scalar_lea.sflag [#allocation8], 1
    %14 = vsyncpa %s13, 0
    %15 = vsyncpa [#allocation11], 0
    %s16 = scalar_lea.sflag [#allocation11], 1
    %17 = vsyncpa %s16, 0
    %18 = vsyncpa [#allocation6], 0
    %s19 = scalar_lea.sflag [#allocation6], 1
    %20 = vsyncpa %s19, 0
    loop: start=0, step=1, limit=6
    $region2: #{tpu_custom_call.1} parent=1 // loop_pre_header
      _
    $region3: #{tpu_custom_call.1} parent=1 // loop_header
      %s22 = sphi 0, %s26
      %p23 = scmp.ge.s32.totalorder %s22, 6
      %s32 = sphi 0, %s34
      %s35 = sphi 0, %s32
      %s36 = sphi 0, %s35
      %s52 = sphi 0, %s36
      %s62 = sphi 0, %s64
      %s65 = sphi 0, %s62
      %s66 = sphi 0, %s65
      %s82 = sphi 0, %s66
      %s92 = sphi 0, %s94
      %s95 = sphi 0, %s92
      %s96 = sphi 0, %s95
      %s112 = sphi 0, %s96
      %s122 = sphi 0, %s124
      %s125 = sphi 0, %s122
      %s126 = sphi 0, %s125
      %s142 = sphi 0, %s126
      %s148 = sphi 0, %s150
      %s151 = sphi 0, %s148
      %s152 = sphi 0, %s151
      %s168 = sphi 0, %s152
    $region4: #{tpu_custom_call.1} parent=1 // loop_header_branch
      %25 = sbr.rel (%p23) target = $region8
    $region5: #{tpu_custom_call.1} parent=1 // loop_body
      %s27 = ssub.s32 %s22, 1
      %s28 = ssub.s32 %s22, 2
      %s29 = sadd.s32 %s22, 1
      %s30 = ssub.s32 %s22, %s29
      %p31 = scmp.eq.s32.totalorder %s30, 0
      %s33 = sadd.s32 %s32, 1
      %s34 = scalar_select %p31, %s32, %s33
      %p37 = pneg %p31
      %p38 = scmp.eq.s32.totalorder %s22, 3
      %p39 = por %p37, %p38
      %p40 = scmp.ne.s32.totalorder %s32, %s35
      %p41 = scmp.eq.s32.totalorder %s22, 0
      %p42 = por %p40, %p41
      %p43 = scmp.ne.s32.totalorder %s32, %s35
      %p44 = scmp.eq.s32.totalorder %s27, 3
      %p45 = por %p43, %p44
      %p46 = scmp.ne.s32.totalorder %s35, %s36
      %p47 = scmp.eq.s32.totalorder %s27, 0
      %p48 = por %p46, %p47
      %p49 = scmp.ne.s32.totalorder %s35, %s36
      %p50 = scmp.eq.s32.totalorder %s28, 3
      %p51 = por %p49, %p50
      %p53 = scmp.ne.s32.totalorder %s36, %s52
      %p54 = scmp.eq.s32.totalorder %s28, 0
      %p55 = por %p53, %p54
      %p56 = scmp.lt.s32.totalorder %s22, 2
      %s57 = scalar_select %p56, %s22, 2
      %p58 = scmp.lt.s32.totalorder %s29, 2
      %s59 = scalar_select %p58, %s29, 2
      %s60 = ssub.s32 %s57, %s59
      %p61 = scmp.eq.s32.totalorder %s60, 0
      %s63 = sadd.s32 %s62, 1
      %s64 = scalar_select %p61, %s62, %s63
      %p67 = pneg %p61
      %p68 = scmp.eq.s32.totalorder %s22, 3
      %p69 = por %p67, %p68
      %p70 = scmp.ne.s32.totalorder %s62, %s65
      %p71 = scmp.eq.s32.totalorder %s22, 0
      %p72 = por %p70, %p71
      %p73 = scmp.ne.s32.totalorder %s62, %s65
      %p74 = scmp.eq.s32.totalorder %s27, 3
      %p75 = por %p73, %p74
      %p76 = scmp.ne.s32.totalorder %s65, %s66
      %p77 = scmp.eq.s32.totalorder %s27, 0
      %p78 = por %p76, %p77
      %p79 = scmp.ne.s32.totalorder %s65, %s66
      %p80 = scmp.eq.s32.totalorder %s28, 3
      %p81 = por %p79, %p80
      %p83 = scmp.ne.s32.totalorder %s66, %s82
      %p84 = scmp.eq.s32.totalorder %s28, 0
      %p85 = por %p83, %p84
      %p86 = scmp.lt.s32.totalorder %s22, 2
      %s87 = scalar_select %p86, %s22, 2
      %p88 = scmp.lt.s32.totalorder %s29, 2
      %s89 = scalar_select %p88, %s29, 2
      %s90 = ssub.s32 %s87, %s89
      %p91 = scmp.eq.s32.totalorder %s90, 0
      %s93 = sadd.s32 %s92, 1
      %s94 = scalar_select %p91, %s92, %s93
      %p97 = pneg %p91
      %p98 = scmp.eq.s32.totalorder %s22, 3
      %p99 = por %p97, %p98
      %p100 = scmp.ne.s32.totalorder %s92, %s95
      %p101 = scmp.eq.s32.totalorder %s22, 0
      %p102 = por %p100, %p101
      %p103 = scmp.ne.s32.totalorder %s92, %s95
      %p104 = scmp.eq.s32.totalorder %s27, 3
      %p105 = por %p103, %p104
      %p106 = scmp.ne.s32.totalorder %s95, %s96
      %p107 = scmp.eq.s32.totalorder %s27, 0
      %p108 = por %p106, %p107
      %p109 = scmp.ne.s32.totalorder %s95, %s96
      %p110 = scmp.eq.s32.totalorder %s28, 3
      %p111 = por %p109, %p110
      %p113 = scmp.ne.s32.totalorder %s96, %s112
      %p114 = scmp.eq.s32.totalorder %s28, 0
      %p115 = por %p113, %p114
      %p116 = scmp.lt.s32.totalorder %s22, 2
      %s117 = scalar_select %p116, %s22, 2
      %p118 = scmp.lt.s32.totalorder %s29, 2
      %s119 = scalar_select %p118, %s29, 2
      %s120 = ssub.s32 %s117, %s119
      %p121 = scmp.eq.s32.totalorder %s120, 0
      %s123 = sadd.s32 %s122, 1
      %s124 = scalar_select %p121, %s122, %s123
      %p127 = pneg %p121
      %p128 = scmp.eq.s32.totalorder %s22, 3
      %p129 = por %p127, %p128
      %p130 = scmp.ne.s32.totalorder %s122, %s125
      %p131 = scmp.eq.s32.totalorder %s22, 0
      %p132 = por %p130, %p131
      %p133 = scmp.ne.s32.totalorder %s122, %s125
      %p134 = scmp.eq.s32.totalorder %s27, 3
      %p135 = por %p133, %p134
      %p136 = scmp.ne.s32.totalorder %s125, %s126
      %p137 = scmp.eq.s32.totalorder %s27, 0
      %p138 = por %p136, %p137
      %p139 = scmp.ne.s32.totalorder %s125, %s126
      %p140 = scmp.eq.s32.totalorder %s28, 3
      %p141 = por %p139, %p140
      %p143 = scmp.ne.s32.totalorder %s126, %s142
      %p144 = scmp.eq.s32.totalorder %s28, 0
      %p145 = por %p143, %p144
      %s146 = ssub.s32 %s22, %s29
      %p147 = scmp.eq.s32.totalorder %s146, 0
      %s149 = sadd.s32 %s148, 1
      %s150 = scalar_select %p147, %s148, %s149
      %p153 = pneg %p147
      %p154 = scmp.eq.s32.totalorder %s22, 3
      %p155 = por %p153, %p154
      %p156 = scmp.ne.s32.totalorder %s148, %s151
      %p157 = scmp.eq.s32.totalorder %s22, 0
      %p158 = por %p156, %p157
      %p159 = scmp.ne.s32.totalorder %s148, %s151
      %p160 = scmp.eq.s32.totalorder %s27, 3
      %p161 = por %p159, %p160
      %p162 = scmp.ne.s32.totalorder %s151, %s152
      %p163 = scmp.eq.s32.totalorder %s27, 0
      %p164 = por %p162, %p163
      %p165 = scmp.ne.s32.totalorder %s151, %s152
      %p166 = scmp.eq.s32.totalorder %s28, 3
      %p167 = por %p165, %p166
      %p169 = scmp.ne.s32.totalorder %s152, %s168
      %p170 = scmp.eq.s32.totalorder %s28, 0
      %p171 = por %p169, %p170
      %p172 = scmp.le.s32.totalorder 1, %s22
      %p173 = scmp.lt.s32.totalorder %s22, 5
      %p174 = pnand %p172, %p173
      %p175 = pneg %p174
      // Predicated region
      $region9: #{tpu_custom_call.1} parent=5 // pred_check
        _
      $region10: #{tpu_custom_call.1} parent=5 // pred_check_branch
        %177 = sbr.rel (%p174) target = $region12
      $region11: #{tpu_custom_call.1} parent=5 // pred_region
        %s178 = ssub.s32 %s22, 1
      $region12: #{tpu_custom_call.1} parent=5 // pred_fallthru
        _
      %p179 = scmp.lt.s32.totalorder %s22, 4
      // Predicated region
      $region13: #{tpu_custom_call.1} parent=5 // pred_check
        %p180 = pneg %p179
      $region14: #{tpu_custom_call.1} parent=5 // pred_check_branch
        %182 = sbr.rel (%p180) target = $region16
      $region15: #{tpu_custom_call.1} parent=5 // pred_region
        // Predicated region
        $region17: #{tpu_custom_call.1} parent=15 // pred_check
          %p183 = pneg %p42
        $region18: #{tpu_custom_call.1} parent=15 // pred_check_branch
          %185 = sbr.rel (%p183) target = $region20
        $region19: #{tpu_custom_call.1} parent=15 // pred_region
          %s186 = sand.u32 %s32, 1
          %s187 = scalar_lea.sflag [#allocation5], %s186
          %s188 = sand.u32 %s32, 1
          %s189 = smul.addr %s188, 16
          %s190 = scalar_lea.vmem [#allocation4], %s189
          %s192 = ssub.s32 256, 256
          %193 = vsyncadd %s187, %s192
          %s194 = smul.addr %s22, 128
          %s195 = scalar_lea.hbm %s0, %s194
          %s196 = sshll.u32 %s190, 4
          %s197 = int_to_ptr.vmem [resolvable:$true] %s196
          %202 = dma.hbm_to_vmem [thread:$0]  %s195, 256, %s197, %s187, 512, 128, 8
        $region20: #{tpu_custom_call.1} parent=15 // pred_fallthru
          _
        // Predicated region
        $region21: #{tpu_custom_call.1} parent=15 // pred_check
          %p203 = pneg %p72
        $region22: #{tpu_custom_call.1} parent=15 // pred_check_branch
          %205 = sbr.rel (%p203) target = $region24
        $region23: #{tpu_custom_call.1} parent=15 // pred_region
          %s206 = sand.u32 %s22, 1
          %s207 = scalar_lea.sflag [#allocation8], %s206
          %s208 = sand.u32 %s62, 1
          %s209 = smul.addr %s208, 8
          %s210 = scalar_lea.vmem [#allocation7], %s209
          %p211 = scmp.lt.s32.totalorder %s22, 2
          %s212 = scalar_select %p211, %s22, 2
          %s214 = ssub.s32 128, 128
          %215 = vsyncadd %s207, %s214
          %s216 = smul.addr %s212, 128
          %s217 = scalar_lea.hbm %s1, %s216
          %s219 = sshll.u32 %s210, 4
          %s220 = int_to_ptr.vmem [resolvable:$true] %s219
          %222 = dma.hbm_to_vmem [thread:$0]  %s217, 128, %s220, %s207
        $region24: #{tpu_custom_call.1} parent=15 // pred_fallthru
          _
        // Predicated region
        $region25: #{tpu_custom_call.1} parent=15 // pred_check
          %p223 = pneg %p102
        $region26: #{tpu_custom_call.1} parent=15 // pred_check_branch
          %225 = sbr.rel (%p223) target = $region28
        $region27: #{tpu_custom_call.1} parent=15 // pred_region
          %s226 = sand.u32 %s22, 1
          %s227 = scalar_lea.sflag [#allocation8], %s226
          %s228 = sand.u32 %s92, 1
          %s229 = smul.addr %s228, 8
          %s230 = scalar_lea.vmem [#allocation9], %s229
          %p231 = scmp.lt.s32.totalorder %s22, 2
          %s232 = scalar_select %p231, %s22, 2
          %s234 = ssub.s32 128, 128
          %235 = vsyncadd %s227, %s234
          %s236 = smul.addr %s232, 128
          %s237 = scalar_lea.hbm %s2, %s236
          %s239 = sshll.u32 %s230, 4
          %s240 = int_to_ptr.vmem [resolvable:$true] %s239
          %242 = dma.hbm_to_vmem [thread:$0]  %s237, 128, %s240, %s227
        $region28: #{tpu_custom_call.1} parent=15 // pred_fallthru
          _
        // Predicated region
        $region29: #{tpu_custom_call.1} parent=15 // pred_check
          %p243 = pneg %p132
        $region30: #{tpu_custom_call.1} parent=15 // pred_check_branch
          %245 = sbr.rel (%p243) target = $region32
        $region31: #{tpu_custom_call.1} parent=15 // pred_region
          %s246 = sand.u32 %s122, 1
          %s247 = scalar_lea.sflag [#allocation11], %s246
          %s248 = sand.u32 %s122, 1
          %s249 = smul.addr %s248, 8
          %s250 = scalar_lea.vmem [#allocation10], %s249
          %p251 = scmp.lt.s32.totalorder %s22, 2
          %s252 = scalar_select %p251, %s22, 2
          %s254 = ssub.s32 128, 128
          %255 = vsyncadd %s247, %s254
          %s256 = smul.addr %s252, 128
          %s257 = scalar_lea.hbm %s3, %s256
          %s259 = sshll.u32 %s250, 4
          %s260 = int_to_ptr.vmem [resolvable:$true] %s259
          %262 = dma.hbm_to_vmem [thread:$0]  %s257, 128, %s260, %s247
        $region32: #{tpu_custom_call.1} parent=15 // pred_fallthru
          _
      $region16: #{tpu_custom_call.1} parent=5 // pred_fallthru
        _
      %p263 = scmp.le.s32.totalorder 1, %s22
      %p264 = scmp.lt.s32.totalorder %s22, 5
      %p265 = pnand %p263, %p264
      %p266 = pneg %p265
      // Predicated region
      $region33: #{tpu_custom_call.1} parent=5 // pred_check
        _
      $region34: #{tpu_custom_call.1} parent=5 // pred_check_branch
        %268 = sbr.rel (%p265) target = $region36
      $region35: #{tpu_custom_call.1} parent=5 // pred_region
        %s269 = ssub.s32 %s22, 1
        %s270 = sand.u32 %s35, 1
        %s271 = scalar_lea.sflag [#allocation5], %s270
        %s272 = sand.u32 %s35, 1
        %s273 = smul.addr %s272, 16
        %s274 = scalar_lea.vmem [#allocation4], %s273
        // Predicated region
        $region37: #{tpu_custom_call.1} parent=35 // pred_check
          %p275 = pneg %p48
        $region38: #{tpu_custom_call.1} parent=35 // pred_check_branch
          %277 = sbr.rel (%p275) target = $region40
        $region39: #{tpu_custom_call.1} parent=35 // pred_region
          %278 = dma.done %s271, 256
        $region40: #{tpu_custom_call.1} parent=35 // pred_fallthru
          _
        %s279 = sand.u32 %s27, 1
        %s280 = scalar_lea.sflag [#allocation8], %s279
        %s281 = sand.u32 %s65, 1
        %s282 = smul.addr %s281, 8
        %s283 = scalar_lea.vmem [#allocation7], %s282
        // Predicated region
        $region41: #{tpu_custom_call.1} parent=35 // pred_check
          %p284 = pneg %p78
        $region42: #{tpu_custom_call.1} parent=35 // pred_check_branch
          %286 = sbr.rel (%p284) target = $region44
        $region43: #{tpu_custom_call.1} parent=35 // pred_region
          %287 = dma.done %s280, 128
        $region44: #{tpu_custom_call.1} parent=35 // pred_fallthru
          _
        %s288 = sand.u32 %s27, 1
        %s289 = scalar_lea.sflag [#allocation8], %s288
        %s290 = sand.u32 %s95, 1
        %s291 = smul.addr %s290, 8
        %s292 = scalar_lea.vmem [#allocation9], %s291
        // Predicated region
        $region45: #{tpu_custom_call.1} parent=35 // pred_check
          %p293 = pneg %p108
        $region46: #{tpu_custom_call.1} parent=35 // pred_check_branch
          %295 = sbr.rel (%p293) target = $region48
        $region47: #{tpu_custom_call.1} parent=35 // pred_region
          %296 = dma.done %s289, 128
        $region48: #{tpu_custom_call.1} parent=35 // pred_fallthru
          _
        %s297 = sand.u32 %s125, 1
        %s298 = scalar_lea.sflag [#allocation11], %s297
        %s299 = sand.u32 %s125, 1
        %s300 = smul.addr %s299, 8
        %s301 = scalar_lea.vmem [#allocation10], %s300
        // Predicated region
        $region49: #{tpu_custom_call.1} parent=35 // pred_check
          %p302 = pneg %p138
        $region50: #{tpu_custom_call.1} parent=35 // pred_check_branch
          %304 = sbr.rel (%p302) target = $region52
        $region51: #{tpu_custom_call.1} parent=35 // pred_region
          %305 = dma.done %s298, 128
        $region52: #{tpu_custom_call.1} parent=35 // pred_fallthru
          _
        %s306 = sand.u32 %s35, 1
        %s307 = scalar_lea.sflag [#allocation5], %s306
        %s308 = sand.u32 %s35, 1
        %s309 = smul.addr %s308, 16
        %s310 = scalar_lea.vmem [#allocation4], %s309
        %p311 = pneg %p48
        %p312 = pneg %p45
        %s313 = sand.u32 %s27, 1
        %s314 = scalar_lea.sflag [#allocation8], %s313
        %s315 = sand.u32 %s65, 1
        %s316 = smul.addr %s315, 8
        %s317 = scalar_lea.vmem [#allocation7], %s316
        %p318 = pneg %p78
        %p319 = pneg %p75
        %s320 = sand.u32 %s27, 1
        %s321 = scalar_lea.sflag [#allocation8], %s320
        %s322 = sand.u32 %s95, 1
        %s323 = smul.addr %s322, 8
        %s324 = scalar_lea.vmem [#allocation9], %s323
        %p325 = pneg %p108
        %p326 = pneg %p105
        %s327 = sand.u32 %s125, 1
        %s328 = scalar_lea.sflag [#allocation11], %s327
        %s329 = sand.u32 %s125, 1
        %s330 = smul.addr %s329, 8
        %s331 = scalar_lea.vmem [#allocation10], %s330
        %p332 = pneg %p138
        %p333 = pneg %p135
        %p334 = pneg %p164
        %p335 = pneg %p161
        %s336 = sand.u32 %s151, 1
        %s337 = scalar_lea.sflag [#allocation6], %s336
        %s338 = sand.u32 %s151, 1
        %s339 = smul.addr %s338, 16
        %s340 = scalar_lea.vmem [#allocation12], %s339
        %p341 = scmp.lt.s32.totalorder %s27, 2
        %s342 = scalar_select %p341, %s27, 2
        %p343 = scmp.lt.s32.totalorder %s27, 2
        %s344 = scalar_select %p343, %s27, 2
        %p345 = scmp.lt.s32.totalorder %s27, 2
        %s346 = scalar_select %p345, %s27, 2
        %p347 = scmp.ge.s32.totalorder %s27, 3
        // Predicated region
        $region53: #{tpu_custom_call.1} parent=35 // pred_check
          %p348 = pneg %p347
        $region54: #{tpu_custom_call.1} parent=35 // pred_check_branch
          %350 = sbr.rel (%p348) target = $region56
        $region55: #{tpu_custom_call.1} parent=35 // pred_region
          %v351 = vld [vmem:[%s274] sm:$0xff]
          %v352 = vld [vmem:[%s274 + $0x8] sm:$0xff]
          %353 = vst [vmem:[%s340] sm:$0xff] %v351
          %354 = vst [vmem:[%s340 + $0x8] sm:$0xff] %v352
        $region56: #{tpu_custom_call.1} parent=35 // pred_fallthru
          _
        %p355 = scmp.lt.s32.totalorder %s27, 3
        // Predicated region
        $region57: #{tpu_custom_call.1} parent=35 // pred_check
          %p356 = pneg %p355
        $region58: #{tpu_custom_call.1} parent=35 // pred_check_branch
          %358 = sbr.rel (%p356) target = $region60
        $region59: #{tpu_custom_call.1} parent=35 // pred_region
          %p359 = scmp.eq.s32.totalorder %s27, 0
          // Predicated region
          $region61: #{tpu_custom_call.1} parent=59 // pred_check
            %p360 = pneg %p359
          $region62: #{tpu_custom_call.1} parent=59 // pred_check_branch
            %362 = sbr.rel (%p360) target = $region64
          $region63: #{tpu_custom_call.1} parent=59 // pred_region
            %363 = vst [vmem:[#allocation2] sm:$0xff] 0.0
            %364 = vst [vmem:[#allocation2 + $0x8] sm:$0xff] 0.0
          $region64: #{tpu_custom_call.1} parent=59 // pred_fallthru
            _
          %v365 = vld [vmem:[%s274] sm:$0xff]
          %v366 = vld [vmem:[%s274 + $0x8] sm:$0xff]
          %v367 = vld [vmem:[#allocation2] sm:$0xff]
          %v368 = vld [vmem:[#allocation2 + $0x8] sm:$0xff]
          %v369 = vadd.f32 %v367, %v365
          %v370 = vadd.f32 %v368, %v366
          %371 = vrot.lane.b32.xlu0 %v369, 1
          %v372 = vpop.permute.xlu0 %371
          %373 = vrot.lane.b32.xlu0 %v370, 1
          %v374 = vpop.permute.xlu0 %373
          %v375 = vlaneseq
          %v376 = vand.u32 %v375, 127
          %vm377 = vcmp.ge.s32.totalorder %v376, 1
          %v378 = vsel %vm377, %v372, 0.0
          %v379 = vsel %vm377, %v374, 0.0
          %380 = vrot.lane.b32.xlu0 %v369, 127
          %v381 = vpop.permute.xlu0 %380
          %382 = vrot.lane.b32.xlu0 %v370, 127
          %v383 = vpop.permute.xlu0 %382
          %vm384 = vcmp.lt.s32.totalorder %v376, 127
          %v385 = vsel %vm384, %v381, 0.0
          %v386 = vsel %vm384, %v383, 0.0
          %v387 = vld [vmem:[%s283] sm:$0xff]
          %vm388 = vcmask 195584
          %v390 = vsel %vm388, %v387, 0
          %392 = vmatprep.subr.mxu0 0.0
          %393 = vmatpush1.msra.mxu0 %v378
          %394 = vmatprep.subr.mxu0 0.0
          %395 = vmatpush1.msra.mxu0 %v369
          %396 = vmatprep.subr.mxu0 0.0
          %397 = vmatpush1.msra.mxu0 %v385
          %398 = vmatprep.subr.mxu0 0.0
          %399 = vmatpush1.msra.mxu0 0.0
          %400 = vmatprep.subr.mxu0 0.0
          %401 = vmatpush1.msra.mxu0 0.0
          %402 = vmatprep.subr.mxu0 0.0
          %403 = vmatpush1.msra.mxu0 0.0
          %404 = vmatprep.subr.mxu0 0.0
          %405 = vmatpush1.msra.mxu0 0.0
          %406 = vmatprep.subr.mxu0 0.0
          %407 = vmatpush1.msra.mxu0 0.0
          %408 = vmatprep.subr.mxu0 0.0
          %409 = vmatpush1.msra.mxu0 0.0
          %410 = vmatprep.subr.mxu0 0.0
          %411 = vmatpush1.msra.mxu0 0.0
          %412 = vmatprep.subr.mxu0 0.0
          %413 = vmatpush1.msra.mxu0 0.0
          %414 = vmatprep.subr.mxu0 0.0
          %415 = vmatpush1.msra.mxu0 0.0
          %416 = vmatprep.subr.mxu0 0.0
          %417 = vmatpush1.msra.mxu0 0.0
          %418 = vmatprep.subr.mxu0 0.0
          %419 = vmatpush1.msra.mxu0 0.0
          %420 = vmatprep.subr.mxu0 0.0
          %421 = vmatpush1.msra.mxu0 0.0
          %422 = vmatprep.subr.mxu0 0.0
          %423 = vmatpush1.msra.mxu0 0.0
          %424 = vmatprep.subr.mxu0 0.0
          %425 = vmatpush1.msra.mxu0 0.0
          %426 = vmatprep.subr.mxu0 0.0
          %427 = vmatpush1.msra.mxu0 0.0
          %428 = vmatprep.subr.mxu0 0.0
          %429 = vmatpush1.msra.mxu0 0.0
          %430 = vmatprep.subr.mxu0 0.0
          %431 = vmatpush1.msra.mxu0 0.0
          %432 = vmatprep.subr.mxu0 0.0
          %433 = vmatpush1.msra.mxu0 0.0
          %434 = vmatprep.subr.mxu0 0.0
          %435 = vmatpush1.msra.mxu0 0.0
          %436 = vmatprep.subr.mxu0 0.0
          %437 = vmatpush1.msra.mxu0 0.0
          %438 = vmatprep.subr.mxu0 0.0
          %439 = vmatpush1.msra.mxu0 0.0
          %440 = vmatprep.subr.mxu0 0.0
          %441 = vmatpush1.msra.mxu0 0.0
          %442 = vmatprep.subr.mxu0 0.0
          %443 = vmatpush1.msra.mxu0 0.0
          %444 = vmatprep.subr.mxu0 0.0
          %445 = vmatpush1.msra.mxu0 0.0
          %446 = vmatprep.subr.mxu0 0.0
          %447 = vmatpush1.msra.mxu0 0.0
          %448 = vmatprep.subr.mxu0 0.0
          %449 = vmatpush1.msra.mxu0 0.0
          %450 = vmatprep.subr.mxu0 0.0
          %451 = vmatpush1.msra.mxu0 0.0
          %452 = vmatprep.subr.mxu0 0.0
          %453 = vmatpush1.msra.mxu0 0.0
          %454 = vmatprep.subr.mxu0 0.0
          %455 = vmatpush1.msra.mxu0 0.0
          %456 = vmatprep.mubr.f32.mxu0 0.0
          %457 = vmatmul.mubr.f32.gmra.mrb[0].mxu0 %v390
          %v458 = vpop.f32.mrb[0].mxu0
          %v459 = vadd.f32 0.0, %v458
          %v460 = vpop.f32.mrb[0].mxu0
          %461 = vdwg.mxu0
          %v462 = vmax.f32 %v459, 0.0
          %463 = vst [vmem:[#allocation3] sm:$0xff] %v462
          %464 = vadd.xlane.f32.xlu0 %v462
          %v465 = vpop.xlane.xlu0 %464
          %v466 = vadd.f32 %v465, 0.0
          %v467 = vmul.f32 %v462, %v462
          %468 = vadd.xlane.f32.xlu0 %v467
          %v469 = vpop.xlane.xlu0 %468
          %v470 = vadd.f32 %v469, 0.0
          %471 = vmatprep.subr.mxu0 0.0
          %472 = vmatpush1.msra.mxu0 %v379
          %473 = vmatprep.subr.mxu0 0.0
          %474 = vmatpush1.msra.mxu0 %v370
          %475 = vmatprep.subr.mxu0 0.0
          %476 = vmatpush1.msra.mxu0 %v386
          %477 = vmatprep.subr.mxu0 0.0
          %478 = vmatpush1.msra.mxu0 0.0
          %479 = vmatprep.subr.mxu0 0.0
          %480 = vmatpush1.msra.mxu0 0.0
          %481 = vmatprep.subr.mxu0 0.0
          %482 = vmatpush1.msra.mxu0 0.0
          %483 = vmatprep.subr.mxu0 0.0
          %484 = vmatpush1.msra.mxu0 0.0
          %485 = vmatprep.subr.mxu0 0.0
          %486 = vmatpush1.msra.mxu0 0.0
          %487 = vmatprep.subr.mxu0 0.0
          %488 = vmatpush1.msra.mxu0 0.0
          %489 = vmatprep.subr.mxu0 0.0
          %490 = vmatpush1.msra.mxu0 0.0
          %491 = vmatprep.subr.mxu0 0.0
          %492 = vmatpush1.msra.mxu0 0.0
          %493 = vmatprep.subr.mxu0 0.0
          %494 = vmatpush1.msra.mxu0 0.0
          %495 = vmatprep.subr.mxu0 0.0
          %496 = vmatpush1.msra.mxu0 0.0
          %497 = vmatprep.subr.mxu0 0.0
          %498 = vmatpush1.msra.mxu0 0.0
          %499 = vmatprep.subr.mxu0 0.0
          %500 = vmatpush1.msra.mxu0 0.0
          %501 = vmatprep.subr.mxu0 0.0
          %502 = vmatpush1.msra.mxu0 0.0
          %503 = vmatprep.subr.mxu0 0.0
          %504 = vmatpush1.msra.mxu0 0.0
          %505 = vmatprep.subr.mxu0 0.0
          %506 = vmatpush1.msra.mxu0 0.0
          %507 = vmatprep.subr.mxu0 0.0
          %508 = vmatpush1.msra.mxu0 0.0
          %509 = vmatprep.subr.mxu0 0.0
          %510 = vmatpush1.msra.mxu0 0.0
          %511 = vmatprep.subr.mxu0 0.0
          %512 = vmatpush1.msra.mxu0 0.0
          %513 = vmatprep.subr.mxu0 0.0
          %514 = vmatpush1.msra.mxu0 0.0
          %515 = vmatprep.subr.mxu0 0.0
          %516 = vmatpush1.msra.mxu0 0.0
          %517 = vmatprep.subr.mxu0 0.0
          %518 = vmatpush1.msra.mxu0 0.0
          %519 = vmatprep.subr.mxu0 0.0
          %520 = vmatpush1.msra.mxu0 0.0
          %521 = vmatprep.subr.mxu0 0.0
          %522 = vmatpush1.msra.mxu0 0.0
          %523 = vmatprep.subr.mxu0 0.0
          %524 = vmatpush1.msra.mxu0 0.0
          %525 = vmatprep.subr.mxu0 0.0
          %526 = vmatpush1.msra.mxu0 0.0
          %527 = vmatprep.subr.mxu0 0.0
          %528 = vmatpush1.msra.mxu0 0.0
          %529 = vmatprep.subr.mxu0 0.0
          %530 = vmatpush1.msra.mxu0 0.0
          %531 = vmatprep.subr.mxu0 0.0
          %532 = vmatpush1.msra.mxu0 0.0
          %533 = vmatprep.subr.mxu0 0.0
          %534 = vmatpush1.msra.mxu0 0.0
          %535 = vmatprep.mubr.f32.mxu0 0.0
          %536 = vmatmul.mubr.f32.gmra.mrb[0].mxu0 %v390
          %v537 = vpop.f32.mrb[0].mxu0
          %v538 = vadd.f32 0.0, %v537
          %v539 = vpop.f32.mrb[0].mxu0
          %540 = vdwg.mxu0
          %v541 = vmax.f32 %v538, 0.0
          %s542 = scalar_lea.vmem [#allocation3], 8
          %543 = vst [vmem:[%s542] sm:$0xff] %v541
          %544 = vadd.xlane.f32.xlu0 %v541
          %v545 = vpop.xlane.xlu0 %544
          %v546 = vadd.f32 %v466, %v545
          %v547 = vmul.f32 %v541, %v541
          %548 = vadd.xlane.f32.xlu0 %v547
          %v549 = vpop.xlane.xlu0 %548
          %v550 = vadd.f32 %v470, %v549
          %v551 = vmul.f32 %v546, 0.00390625
          %v552 = vmul.f32 %v550, 0.00390625
          %v553 = vmul.f32 %v551, %v551
          %v554 = vsub.f32 %v552, %v553
          %v555 = vld [vmem:[%s292] sm:$0xff]
          %v556 = vadd.f32 %v554, 1e-05
          %v557 = vrsqrt.pop %v556
          %v558 = vmul.f32 %v555, %v557
          %v559 = vld [vmem:[%s301] sm:$0xff]
          %v560 = vmul.f32 %v551, %v558
          %v561 = vsub.f32 %v559, %v560
          %v562 = vld [vmem:[#allocation3] sm:$0xff]
          %v563 = vld [vmem:[#allocation3 + $0x8] sm:$0xff]
          %565 = vset.pattern.permute.xlu0 0
          %566 = vperm.xlu0 %565, %v558
          %v567 = vpop.permute.xlu0 %566
          %v569 = vmul.f32 %v562, %v567
          %v570 = vmul.f32 %v563, %v567
          %572 = vset.pattern.permute.xlu0 0
          %573 = vperm.xlu0 %572, %v561
          %v574 = vpop.permute.xlu0 %573
          %v576 = vadd.f32 %v569, %v574
          %v577 = vadd.f32 %v570, %v574
          %578 = vst [vmem:[%s340] sm:$0xff] %v576
          %579 = vst [vmem:[%s340 + $0x8] sm:$0xff] %v577
          %580 = vst [vmem:[#allocation2] sm:$0xff] %v576
          %581 = vst [vmem:[#allocation2 + $0x8] sm:$0xff] %v577
        $region60: #{tpu_custom_call.1} parent=35 // pred_fallthru
          _
        %s582 = sand.u32 %s151, 1
        %s583 = scalar_lea.sflag [#allocation6], %s582
        %s584 = sand.u32 %s151, 1
        %s585 = smul.addr %s584, 16
        %s586 = scalar_lea.vmem [#allocation12], %s585
        // Predicated region
        $region65: #{tpu_custom_call.1} parent=35 // pred_check
          %p587 = pneg %p161
        $region66: #{tpu_custom_call.1} parent=35 // pred_check_branch
          %589 = sbr.rel (%p587) target = $region68
        $region67: #{tpu_custom_call.1} parent=35 // pred_region
          %s591 = ssub.s32 256, 256
          %592 = vsyncadd %s583, %s591
          %s593 = smul.addr %s27, 128
          %s594 = scalar_lea.hbm %s4, %s593
          %s595 = sshll.u32 %s586, 4
          %s596 = int_to_ptr.vmem [resolvable:$true] %s595
          %601 = dma.vmem_to_hbm [thread:$0]  %s596, 256, %s594, %s583, 128, 512, 8
        $region68: #{tpu_custom_call.1} parent=35 // pred_fallthru
          _
      $region36: #{tpu_custom_call.1} parent=5 // pred_fallthru
        _
      %p602 = scmp.le.s32.totalorder 2, %s22
      // Predicated region
      $region69: #{tpu_custom_call.1} parent=5 // pred_check
        %p603 = pneg %p602
      $region70: #{tpu_custom_call.1} parent=5 // pred_check_branch
        %605 = sbr.rel (%p603) target = $region72
      $region71: #{tpu_custom_call.1} parent=5 // pred_region
        %s606 = ssub.s32 %s22, 2
        // Predicated region
        $region73: #{tpu_custom_call.1} parent=71 // pred_check
          %p607 = pneg %p167
        $region74: #{tpu_custom_call.1} parent=71 // pred_check_branch
          %609 = sbr.rel (%p607) target = $region76
        $region75: #{tpu_custom_call.1} parent=71 // pred_region
          %s610 = sand.u32 %s152, 1
          %s611 = scalar_lea.sflag [#allocation6], %s610
          %s612 = sand.u32 %s152, 1
          %s613 = smul.addr %s612, 16
          %s614 = scalar_lea.vmem [#allocation12], %s613
          %615 = dma.done %s611, 256
        $region76: #{tpu_custom_call.1} parent=71 // pred_fallthru
          _
      $region72: #{tpu_custom_call.1} parent=5 // pred_fallthru
        _
    $region6: #{tpu_custom_call.1} parent=1 // loop_footer
      %s26 = sadd.s32 1, %s22
    $region7: #{tpu_custom_call.1} parent=1 // loop_footer_branch
      %21 = sbr.rel target = $region3
    $region8: #{tpu_custom_call.1} parent=1 // loop_exit
      _
    %616 = vsyncpa [#allocation5], 1
    %s617 = scalar_lea.sflag [#allocation5], 1
    %618 = vsyncpa %s617, 1
    %619 = vsyncpa [#allocation8], 1
    %s620 = scalar_lea.sflag [#allocation8], 1
    %621 = vsyncpa %s620, 1
    %622 = vsyncpa [#allocation11], 1
    %s623 = scalar_lea.sflag [#allocation11], 1
    %624 = vsyncpa %s623, 1
    %625 = vsyncpa [#allocation6], 1
    %s626 = scalar_lea.sflag [#allocation6], 1
    %627 = vsyncpa %s626, 1

</llo_original>
